<compile_context>
chip_gen: v7x
topology: tpu7x:2x2x1
jax: 0.10.0
libtpu: 0.0.40
codegen_flags: <defaults>
</compile_context>

<pallas_src>
import math
from functools import partial

import jax
import jax.numpy as jnp
from jax.experimental import pallas as pl
from jax.experimental.pallas import tpu as pltpu

DROPOUT_P = 0.2
MAX_LEN = 1276


def _make_pos_embedding(embedding_size: int, max_len: int = MAX_LEN) -> jnp.ndarray:
    """Deterministic buffer, identical math to the PyTorch __init__ ((L, E))."""
    den = jnp.exp(
        -jnp.arange(0, embedding_size, 2, dtype=jnp.float32)
        * (math.log(10000.0) / embedding_size)
    )                                                      # (E/2,)
    pos = jnp.arange(0, max_len, dtype=jnp.float32).reshape(max_len, 1)
    pe = jnp.zeros((max_len, embedding_size), dtype=jnp.float32)
    pe = pe.at[:, 0::2].set(jnp.sin(pos * den))
    pe = pe.at[:, 1::2].set(jnp.cos(pos * den))
    return pe


# ----------------------------- kernels ------------------------------------ #

def _pe_add_kernel(x_ref, pe_ref, o_ref, *, batch, scale):
    # x_ref: (tile_s, B*E)   pe_ref: (tile_s, E)
    x = x_ref[...]
    if scale != 1.0:
        x = x * scale
    pe = pe_ref[...]
    if batch > 1:
        pe = jnp.tile(pe, (1, batch))            # lane-aligned concat in VMEM
    o_ref[...] = (x + pe).astype(o_ref.dtype)


def _pe_add_dropout_kernel(x_ref, pe_ref, bits_ref, o_ref, *, batch, scale, p):
    x = x_ref[...]
    if scale != 1.0:
        x = x * scale
    pe = pe_ref[...]
    if batch > 1:
        pe = jnp.tile(pe, (1, batch))
    y = x + pe
    # Inverted dropout via a pure integer compare: P(bits >= p*2^32) = 1 - p.
    thresh = jnp.uint32(min(int(round(p * 2.0 ** 32)), 2 ** 32 - 1))
    keep = bits_ref[...] >= thresh
    y = jnp.where(keep, y * (1.0 / (1.0 - p)), jnp.zeros_like(y))
    o_ref[...] = y.astype(o_ref.dtype)


# ----------------------------- wrapper ------------------------------------ #

def positional_encoding_forward(x, pos_embedding, *, key=None, p=DROPOUT_P,
                                training=True, scale=1.0, tile_s=None):
    """x: (S, B, E) float32;  pos_embedding: (max_len, E).  Returns (S, B, E)."""
    S, B, E = x.shape
    BE = B * E
    assert BE % 128 == 0, "batch*embedding_size must be a multiple of 128 " \
                          "(embeddings_size=512 in the module always satisfies this)"

    x2 = x.reshape(S, BE)                        # free reshape (contiguous)
    pe = pos_embedding[:S]                       # (S, E)

    # ~1 MiB x-block per grid step, rows a multiple of 8, capped at S.
    row_bytes = BE * 4
    if tile_s is None:
        tile_s = max(8, ((1 << 20) // row_bytes // 8) * 8)
    tile_s = int(min(tile_s, S))
    grid = (pl.cdiv(S, tile_s),)

    use_dropout = bool(training) and p > 0.0
    n_streams = 3 if use_dropout else 2          # x (+ bits) + out
    resident = 2 * (n_streams * tile_s * row_bytes + tile_s * E * 4)  # double-buffered
    vmem_limit = int(min(96 << 20, max(32 << 20, 2 * resident)))      # safe on v7x (64 MiB)

    x_spec = pl.BlockSpec((tile_s, BE), lambda i: (i, 0))
    pe_spec = pl.BlockSpec((tile_s, E), lambda i: (i, 0))
    out_spec = pl.BlockSpec((tile_s, BE), lambda i: (i, 0))
    params = pltpu.CompilerParams(
        dimension_semantics=("parallel",),       # no carried state -> megacore on v7x
        vmem_limit_bytes=vmem_limit,
    )

    if use_dropout:
        if key is None:
            key = jax.random.PRNGKey(0)
        # TODO(synk): switch to on-chip pltpu.prng_random_bits (saves one HBM read
        # stream) once the runtime used for this kernel lowers prng_seed everywhere.
        bits = jax.random.bits(key, (S, BE), dtype=jnp.uint32)
        kernel = partial(_pe_add_dropout_kernel, batch=B, scale=scale, p=p)
        out2 = pl.pallas_call(
            kernel,
            out_shape=jax.ShapeDtypeStruct((S, BE), x.dtype),
            grid=grid,
            in_specs=[x_spec, pe_spec, x_spec],
            out_specs=out_spec,
            compiler_params=params,
        )(x2, pe, bits)
    else:
        kernel = partial(_pe_add_kernel, batch=B, scale=scale)
        out2 = pl.pallas_call(
            kernel,
            out_shape=jax.ShapeDtypeStruct((S, BE), x.dtype),
            grid=grid,
            in_specs=[x_spec, pe_spec],
            out_specs=out_spec,
            compiler_params=params,
        )(x2, pe)

    return out2.reshape(S, B, E)


# ------------------------------- demo -------------------------------------- #

if __name__ == "__main__":
    # Small shapes consistent with the module: seq=8, batch=2, embeddings_size=512.
    S, B, E = 8, 2, 512
    key = jax.random.PRNGKey(0)
    k_x, k_drop = jax.random.split(key)
    x = jax.random.normal(k_x, (S, B, E), dtype=jnp.float32)
    pos_embedding = _make_pos_embedding(E, MAX_LEN)

    # Eval mode (dropout is identity) -> exact check against the reference.
    out_eval = jax.block_until_ready(
        positional_encoding_forward(x, pos_embedding, training=False))
    ref = x + pos_embedding[:S][:, None, :]
    assert out_eval.shape == (S, B, E)
    assert jnp.allclose(out_eval, ref, atol=1e-6), "eval-mode mismatch"

    # Training mode (inverted dropout, p=0.2): every element must be either 0
    # or ref/(1-p), and roughly p of them are dropped.
    out_train = jax.block_until_ready(
        positional_encoding_forward(x, pos_embedding, key=k_drop,
                                    p=DROPOUT_P, training=True))
    assert out_train.shape == (S, B, E)
    scaled = ref / (1.0 - DROPOUT_P)
    is_zero = jnp.abs(out_train) <= 1e-6
    is_kept = jnp.abs(out_train - scaled) <= 1e-4 * (1.0 + jnp.abs(scaled))
    assert bool(jnp.all(is_zero | is_kept)), "train values outside {0, x/(1-p)}"
    drop_frac = float(jnp.mean(is_zero & ~is_kept))
    assert 0.1 <= drop_frac <= 0.3, f"unexpected drop fraction {drop_frac}"

    print("KERNEL_OK")
</pallas_src>

<mosaic_0001>
module attributes {stable_mosaic.version = 11 : i64} {
  func.func @_pe_add_kernel(%arg0: i32, %arg1: memref<8x1024xf32, #tpu.memory_space<vmem>>, %arg2: memref<8x512xf32, #tpu.memory_space<vmem>>, %arg3: memref<8x1024xf32, #tpu.memory_space<vmem>>) attributes {dimension_semantics = [#tpu.dimension_semantics<parallel>], iteration_bounds = array<i64: 1>, scalar_prefetch = 0 : i64, scratch_operands = 0 : i64, tpu.core_type = #tpu.core_type<tc>, window_params = [{transform_indices = @transform_0, window_bounds = array<i64: 8, 1024>}, {transform_indices = @transform_1, window_bounds = array<i64: 8, 512>}, {transform_indices = @transform_2, window_bounds = array<i64: 8, 1024>}]} {
    %c0 = arith.constant 0 : index
    %c0_0 = arith.constant 0 : index
    %0 = vector.load %arg1[%c0, %c0_0] : memref<8x1024xf32, #tpu.memory_space<vmem>>, vector<8x1024xf32>
    %c0_1 = arith.constant 0 : index
    %c0_2 = arith.constant 0 : index
    %1 = vector.load %arg2[%c0_1, %c0_2] : memref<8x512xf32, #tpu.memory_space<vmem>>, vector<8x512xf32>
    %2 = tpu.concatenate %1, %1 in 1 : vector<8x512xf32>, vector<8x512xf32> -> vector<8x1024xf32>
    %3 = arith.addf %0, %2 : vector<8x1024xf32>
    %c0_3 = arith.constant 0 : index
    %c0_4 = arith.constant 0 : index
    %4 = vector.load %arg3[%c0_3, %c0_4] : memref<8x1024xf32, #tpu.memory_space<vmem>>, vector<8x1024xf32>
    tpu.vector_store %arg3[%c0_3, %c0_4], %3 {strides = array<i32>} : memref<8x1024xf32, #tpu.memory_space<vmem>>, vector<8x1024xf32>,
    return
  }
  func.func @transform_0(%arg0: i32) -> (i32, i32) {
    %c0_i32 = arith.constant 0 : i32
    %c0_i32_0 = arith.constant 0 : i32
    return %arg0, %c0_i32 : i32, i32
  }
  func.func @transform_1(%arg0: i32) -> (i32, i32) {
    %c0_i32 = arith.constant 0 : i32
    %c0_i32_0 = arith.constant 0 : i32
    return %arg0, %c0_i32 : i32, i32
  }
  func.func @transform_2(%arg0: i32) -> (i32, i32) {
    %c0_i32 = arith.constant 0 : i32
    %c0_i32_0 = arith.constant 0 : i32
    return %arg0, %c0_i32 : i32, i32
  }
}

</mosaic_0001>

<llo_original>
// kernel: tpu_custom_call.1
$region0: #{tpu_custom_call.1}
  #allocation0 [shape = 'u32[]', space=smem, size = 0x4, offset = 0x4, fixed_abs, tag = 'smem constant byte address 0x4 - core index']
  #allocation1 [shape = 'u32[144,128]{1,0:T(1,128)}', space=vmem, size = 0x12000, scoped, tag = 'internal scratch']
  %s0 = inlined_call_operand.hbm [shape: f32[8,1024], index: 0, kind: input, shape index: {}]
  %s1 = inlined_call_operand.hbm [shape: f32[8,512], index: 1, kind: input, shape index: {}]
  %s2 = inlined_call_operand.hbm [shape: f32[8,1024], index: 2, kind: output, shape index: {}]
  %s3 = sld [smem:[#allocation0]]
  $region26: #{tpu_custom_call.1} parent=0
    _
  %s5 = ssub.s32 1, %s3
  %s6 = scalar_select 0, %s5, %s3
  $region1: #{tpu_custom_call.1} parent=0
    #allocation2 [shape = 'u8[32768]{0}', space=vmem, size = 0x8000, scoped, tag = 'input window, operand 0, single buffered']
    #allocation3 [shape = 's32[1]{0}', space=sflag, size = 0x4, scoped, tag = 'scoped memory for tpu_custom_call.1']
    #allocation4 [shape = 's32[1]{0}', space=sflag, size = 0x4, scoped, tag = 'scoped memory for tpu_custom_call.1']
    #allocation5 [shape = 'u8[16384]{0}', space=vmem, size = 0x4000, scoped, tag = 'input window, operand 1, single buffered']
    #allocation6 [shape = 's32[1]{0}', space=sflag, size = 0x4, scoped, tag = 'scoped memory for tpu_custom_call.1']
    #allocation7 [shape = 'u8[32768]{0}', space=vmem, size = 0x8000, scoped, tag = 'output window, operand 0, single buffered']
    %7 = vsyncpa [#allocation3], 0
    %8 = vsyncpa [#allocation6], 0
    %9 = vsyncpa [#allocation4], 0
    // Predicated region
    $region2: #{tpu_custom_call.1} parent=1 // pred_check
      _
    $region3: #{tpu_custom_call.1} parent=1 // pred_check_branch
      %11 = sbr.rel (0) target = $region5
    $region4: #{tpu_custom_call.1} parent=1 // pred_region
      %s13 = ssub.s32 1024, 1024
      %14 = vsyncadd [#allocation3], %s13
      %s16 = sshll.u32 [#allocation2], 4
      %s17 = int_to_ptr.vmem [resolvable:$true] %s16
      %19 = dma.hbm_to_vmem [thread:$0]  %s0, 1024, %s17, [#allocation3]
    $region5: #{tpu_custom_call.1} parent=1 // pred_fallthru
      _
    // Predicated region
    $region6: #{tpu_custom_call.1} parent=1 // pred_check
      _
    $region7: #{tpu_custom_call.1} parent=1 // pred_check_branch
      %21 = sbr.rel (0) target = $region9
    $region8: #{tpu_custom_call.1} parent=1 // pred_region
      %s23 = ssub.s32 512, 512
      %24 = vsyncadd [#allocation6], %s23
      %s26 = sshll.u32 [#allocation5], 4
      %s27 = int_to_ptr.vmem [resolvable:$true] %s26
      %29 = dma.hbm_to_vmem [thread:$0]  %s1, 512, %s27, [#allocation6]
    $region9: #{tpu_custom_call.1} parent=1 // pred_fallthru
      _
    // Predicated region
    $region10: #{tpu_custom_call.1} parent=1 // pred_check
      _
    $region11: #{tpu_custom_call.1} parent=1 // pred_check_branch
      %31 = sbr.rel (0) target = $region13
    $region12: #{tpu_custom_call.1} parent=1 // pred_region
      %32 = dma.done [#allocation3], 1024
    $region13: #{tpu_custom_call.1} parent=1 // pred_fallthru
      _
    // Predicated region
    $region14: #{tpu_custom_call.1} parent=1 // pred_check
      _
    $region15: #{tpu_custom_call.1} parent=1 // pred_check_branch
      %34 = sbr.rel (0) target = $region17
    $region16: #{tpu_custom_call.1} parent=1 // pred_region
      %35 = dma.done [#allocation6], 512
    $region17: #{tpu_custom_call.1} parent=1 // pred_fallthru
      _
    %v36 = vld [vmem:[#allocation2] sm:$0xff]
    %v37 = vld [vmem:[#allocation2 + $0x8] sm:$0xff]
    %v38 = vld [vmem:[#allocation2 + $0x10] sm:$0xff]
    %v39 = vld [vmem:[#allocation2 + $0x18] sm:$0xff]
    %v40 = vld [vmem:[#allocation2 + $0x20] sm:$0xff]
    %v41 = vld [vmem:[#allocation2 + $0x28] sm:$0xff]
    %v42 = vld [vmem:[#allocation2 + $0x30] sm:$0xff]
    %v43 = vld [vmem:[#allocation2 + $0x38] sm:$0xff]
    %v44 = vld [vmem:[#allocation5] sm:$0xff]
    %v45 = vld [vmem:[#allocation5 + $0x8] sm:$0xff]
    %v46 = vld [vmem:[#allocation5 + $0x10] sm:$0xff]
    %v47 = vld [vmem:[#allocation5 + $0x18] sm:$0xff]
    %v48 = vadd.f32 %v36, %v44
    %v49 = vadd.f32 %v37, %v45
    %v50 = vadd.f32 %v38, %v46
    %v51 = vadd.f32 %v39, %v47
    %v52 = vadd.f32 %v40, %v44
    %v53 = vadd.f32 %v41, %v45
    %v54 = vadd.f32 %v42, %v46
    %v55 = vadd.f32 %v43, %v47
    %56 = vst [vmem:[#allocation7] sm:$0xff] %v48
    %57 = vst [vmem:[#allocation7 + $0x8] sm:$0xff] %v49
    %58 = vst [vmem:[#allocation7 + $0x10] sm:$0xff] %v50
    %59 = vst [vmem:[#allocation7 + $0x18] sm:$0xff] %v51
    %60 = vst [vmem:[#allocation7 + $0x20] sm:$0xff] %v52
    %61 = vst [vmem:[#allocation7 + $0x28] sm:$0xff] %v53
    %62 = vst [vmem:[#allocation7 + $0x30] sm:$0xff] %v54
    %63 = vst [vmem:[#allocation7 + $0x38] sm:$0xff] %v55
    // Predicated region
    $region18: #{tpu_custom_call.1} parent=1 // pred_check
      _
    $region19: #{tpu_custom_call.1} parent=1 // pred_check_branch
      %65 = sbr.rel (0) target = $region21
    $region20: #{tpu_custom_call.1} parent=1 // pred_region
      %s67 = ssub.s32 1024, 1024
      %68 = vsyncadd [#allocation4], %s67
      %s70 = sshll.u32 [#allocation7], 4
      %s71 = int_to_ptr.vmem [resolvable:$true] %s70
      %73 = dma.vmem_to_hbm [thread:$0]  %s71, 1024, %s2, [#allocation4]
    $region21: #{tpu_custom_call.1} parent=1 // pred_fallthru
      _
    // Predicated region
    $region22: #{tpu_custom_call.1} parent=1 // pred_check
      _
    $region23: #{tpu_custom_call.1} parent=1 // pred_check_branch
      %75 = sbr.rel (0) target = $region25
    $region24: #{tpu_custom_call.1} parent=1 // pred_region
      %76 = dma.done [#allocation4], 1024
    $region25: #{tpu_custom_call.1} parent=1 // pred_fallthru
      _
    %77 = vsyncpa [#allocation3], 1
    %78 = vsyncpa [#allocation6], 1
    %79 = vsyncpa [#allocation4], 1

</llo_original>
